<compile_context>
chip_gen: v7x
topology: tpu7x:2x2x1
jax: 0.10.0
libtpu: 0.0.40
codegen_flags: <defaults>
</compile_context>

<pallas_src>
import jax
import jax.numpy as jnp
from jax.experimental import pallas as pl
from jax.experimental.pallas import tpu as pltpu

LANES = 128


def _round_up(x, m):
    return ((x + m - 1) // m) * m


def _cdiv(a, b):
    return -(-a // b)


def _tpu_generation_params():
    """(max_row_tile, num_splits) per TPU generation.

    v7x: 2 TensorCores + ~3.2 TB/s HBM -> bigger blocks and split the
    reduction across both cores.  v5e/v6e (single TC): no split; 2048-row
    blocks sit on the >85% HBM-roofline plateau with ample scoped-VMEM room.
    """
    try:
        kind = jax.devices()[0].device_kind.lower()
    except Exception:
        kind = ""
    if "7" in kind:            # v7x: 2 TCs, 64 MiB VMEM, 3.2 TB/s HBM
        return 4096, 2
    return 2048, 1             # v5e / v6e / older: single TensorCore


def _make_kernel(nb, inner, partial_rows, has_padded, lanes):
    """Accumulate sum(|F - max(A,B)|) per lane into the resident output tile."""

    def _accum(a_ref, b_ref, f_ref, out_ref, mask_rows=None):
        a = a_ref[...].astype(jnp.float32)
        b = b_ref[...].astype(jnp.float32)
        f = f_ref[...].astype(jnp.float32)
        diff = jnp.abs(f - jnp.maximum(a, b))
        if mask_rows is not None:
            # Only the single partial block pays for this: (row_tile, 1) iota
            # against a static scalar; the select broadcasts across lanes.
            # (select picks 0.0 for masked rows, so stale-VMEM NaN/Inf in the
            # padded region cannot propagate.)
            row_ids = jax.lax.broadcasted_iota(jnp.int32, (diff.shape[0], 1), 0)
            diff = jnp.where(row_ids < mask_rows, diff, 0.0)
        out_ref[...] += jnp.sum(diff, axis=0, keepdims=True).reshape(1, 1, lanes)

    def kernel(a_ref, b_ref, f_ref, out_ref):
        c = pl.program_id(0)
        i = pl.program_id(1)

        @pl.when(i == 0)
        def _():
            out_ref[...] = jnp.zeros_like(out_ref)

        if partial_rows == 0 and not has_padded:
            # Hot path: every block is full -> no branching, no masking.
            _accum(a_ref, b_ref, f_ref, out_ref)
        else:
            blk = c * inner + i
            full_limit = nb - 1 if partial_rows else nb

            @pl.when(blk < full_limit)
            def _():
                _accum(a_ref, b_ref, f_ref, out_ref)

            if partial_rows:
                @pl.when(blk == nb - 1)
                def _():
                    _accum(a_ref, b_ref, f_ref, out_ref, mask_rows=partial_rows)
            # blk >= nb (clamped padded slot): contributes nothing.

    return kernel


def l_intensity(image_A, image_B, image_F):
    """mean(|image_F - max(image_A, image_B)|), matching torch F.l1_loss."""
    assert image_A.shape == image_B.shape == image_F.shape
    n = image_F.size
    rows, tail = divmod(n, LANES)

    if rows < 8 or tail != 0:
        # TODO(synk): element counts not a multiple of 128 use a fused XLA
        # reduction (single pass over HBM) instead of the kernel; an in-kernel
        # flat-index mask could keep these inside Pallas too.
        return jnp.mean(
            jnp.abs(image_F.astype(jnp.float32)
                    - jnp.maximum(image_A.astype(jnp.float32),
                                  image_B.astype(jnp.float32)))
        ).astype(jnp.float32)

    # Zero-copy lane-dense view.
    a2 = image_A.reshape(rows, LANES)
    b2 = image_B.reshape(rows, LANES)
    f2 = image_F.reshape(rows, LANES)

    # Sublane granularity per dtype (f32: 8, bf16: 16, int8/fp8: 32).
    gran = max(
        max(8, 32 // jnp.dtype(x.dtype).itemsize)
        for x in (image_A, image_B, image_F)
    )

    max_row_tile, num_splits = _tpu_generation_params()

    row_tile = min(max_row_tile, _round_up(_cdiv(rows, num_splits), gran))
    nb = _cdiv(rows, row_tile)
    # Avoid a wasted (clamped, re-DMA'd) padded block on medium inputs: only
    # split across cores when the block count divides evenly or is large
    # enough (>= 16) that one wasted block is noise.
    if num_splits > 1 and nb % num_splits != 0 and nb < 16:
        num_splits = 1
        row_tile = min(max_row_tile, _round_up(rows, gran))
        nb = _cdiv(rows, row_tile)

    inner = _cdiv(nb, num_splits)
    has_padded = inner * num_splits != nb
    last_rows = rows - (nb - 1) * row_tile
    partial_rows = 0 if last_rows == row_tile else last_rows

    if has_padded:
        def in_map(c, i):
            # Clamp padded slots onto a valid block (never an OOB DMA); the
            # kernel skips their accumulation entirely.
            return (jnp.minimum(c * inner + i, nb - 1), 0)
    else:
        def in_map(c, i):
            return (c * inner + i, 0)

    in_spec = pl.BlockSpec((row_tile, LANES), in_map)

    itemsize = jnp.dtype(image_F.dtype).itemsize
    block_bytes = row_tile * LANES * itemsize
    # 3 inputs x 2 pipeline buffers + generous headroom; well inside every
    # generation's physical VMEM (<= ~20 MiB even on the v7x 4096-row path).
    vmem_limit = 3 * 2 * block_bytes + (8 << 20)

    partials = pl.pallas_call(
        _make_kernel(nb, inner, partial_rows, has_padded, LANES),
        out_shape=jax.ShapeDtypeStruct((num_splits, 1, LANES), jnp.float32),
        grid_spec=pltpu.PrefetchScalarGridSpec(
            num_scalar_prefetch=0,
            grid=(num_splits, inner),
            in_specs=[in_spec, in_spec, in_spec],
            out_specs=pl.BlockSpec((1, 1, LANES), lambda c, i: (c, 0, 0)),
        ),
        compiler_params=pltpu.CompilerParams(
            dimension_semantics=("parallel", "arbitrary"),
            vmem_limit_bytes=int(vmem_limit)),
        cost_estimate=pl.CostEstimate(
            flops=4 * n,
            transcendentals=0,
            bytes_accessed=3 * n * itemsize + num_splits * LANES * 4),
    )(a2, b2, f2)

    total = jnp.sum(partials)
    return (total / jnp.float32(n)).astype(jnp.float32)


if __name__ == "__main__":
    key = jax.random.PRNGKey(0)
    k1, k2, k3 = jax.random.split(key, 3)

    # Small NCHW image inputs consistent with the module.
    shape = (2, 4, 16, 16)
    image_A = jax.random.uniform(k1, shape, dtype=jnp.float32)
    image_B = jax.random.uniform(k2, shape, dtype=jnp.float32)
    image_F = jax.random.uniform(k3, shape, dtype=jnp.float32)

    loss = jax.block_until_ready(l_intensity(image_A, image_B, image_F))

    # Pure-JAX reference check.
    ref = jnp.mean(jnp.abs(image_F - jnp.maximum(image_A, image_B)))
    assert jnp.allclose(loss, ref, rtol=1e-5, atol=1e-6), (loss, ref)

    print("KERNEL_OK")
</pallas_src>

<mosaic_0001>
module attributes {stable_mosaic.version = 11 : i64} {
  func.func @kernel(%arg0: i32, %arg1: i32, %arg2: memref<16x128xf32, #tpu.memory_space<vmem>>, %arg3: memref<16x128xf32, #tpu.memory_space<vmem>>, %arg4: memref<16x128xf32, #tpu.memory_space<vmem>>, %arg5: memref<1x1x128xf32, #tpu.memory_space<vmem>>) attributes {dimension_semantics = [#tpu.dimension_semantics<parallel>, #tpu.dimension_semantics<arbitrary>], iteration_bounds = array<i64: 1, 1>, scalar_prefetch = 0 : i64, scratch_operands = 0 : i64, tpu.core_type = #tpu.core_type<tc>, window_params = [{transform_indices = @transform_0, window_bounds = array<i64: 16, 128>}, {transform_indices = @transform_1, window_bounds = array<i64: 16, 128>}, {transform_indices = @transform_2, window_bounds = array<i64: 16, 128>}, {transform_indices = @transform_3, window_bounds = array<i64: 1, 1, 128>}]} {
    %c0_i32 = arith.constant 0 : i32
    %0 = arith.cmpi eq, %arg1, %c0_i32 : i32
    %1 = arith.extui %0 : i1 to i32
    %c0_i32_0 = arith.constant 0 : i32
    %2 = arith.cmpi ne, %1, %c0_i32_0 : i32
    scf.if %2 {
      %cst_12 = arith.constant 0.000000e+00 : f32
      %15 = vector.broadcast %cst_12 : f32 to vector<1x1x128xf32>
      %c0_13 = arith.constant 0 : index
      %c0_14 = arith.constant 0 : index
      %c0_15 = arith.constant 0 : index
      %16 = vector.load %arg5[%c0_13, %c0_14, %c0_15] : memref<1x1x128xf32, #tpu.memory_space<vmem>>, vector<1x1x128xf32>
      tpu.vector_store %arg5[%c0_13, %c0_14, %c0_15], %15 {strides = array<i32>} : memref<1x1x128xf32, #tpu.memory_space<vmem>>, vector<1x1x128xf32>,
    } else {
    }
    %c0 = arith.constant 0 : index
    %c0_1 = arith.constant 0 : index
    %3 = vector.load %arg2[%c0, %c0_1] : memref<16x128xf32, #tpu.memory_space<vmem>>, vector<16x128xf32>
    %c0_2 = arith.constant 0 : index
    %c0_3 = arith.constant 0 : index
    %4 = vector.load %arg3[%c0_2, %c0_3] : memref<16x128xf32, #tpu.memory_space<vmem>>, vector<16x128xf32>
    %c0_4 = arith.constant 0 : index
    %c0_5 = arith.constant 0 : index
    %5 = vector.load %arg4[%c0_4, %c0_5] : memref<16x128xf32, #tpu.memory_space<vmem>>, vector<16x128xf32>
    %6 = arith.maximumf %3, %4 : vector<16x128xf32>
    %7 = arith.subf %5, %6 : vector<16x128xf32>
    %8 = math.absf %7 : vector<16x128xf32>
    %c0_6 = arith.constant 0 : index
    %c0_7 = arith.constant 0 : index
    %c0_8 = arith.constant 0 : index
    %9 = vector.load %arg5[%c0_6, %c0_7, %c0_8] : memref<1x1x128xf32, #tpu.memory_space<vmem>>, vector<1x1x128xf32>
    %cst = arith.constant dense<0.000000e+00> : vector<128xf32>
    %10 = vector.multi_reduction <add>, %8, %cst [0] : vector<16x128xf32> to vector<128xf32>
    %11 = vector.shape_cast %10 : vector<128xf32> to vector<1x128xf32>
    %12 = vector.shape_cast %11 : vector<1x128xf32> to vector<1x1x128xf32>
    %13 = arith.addf %9, %12 : vector<1x1x128xf32>
    %c0_9 = arith.constant 0 : index
    %c0_10 = arith.constant 0 : index
    %c0_11 = arith.constant 0 : index
    %14 = vector.load %arg5[%c0_9, %c0_10, %c0_11] : memref<1x1x128xf32, #tpu.memory_space<vmem>>, vector<1x1x128xf32>
    tpu.vector_store %arg5[%c0_9, %c0_10, %c0_11], %13 {strides = array<i32>} : memref<1x1x128xf32, #tpu.memory_space<vmem>>, vector<1x1x128xf32>,
    return
  }
  func.func @transform_0(%arg0: i32, %arg1: i32) -> (i32, i32) {
    %c1_i32 = arith.constant 1 : i32
    %0 = arith.muli %arg0, %c1_i32 : i32
    %1 = arith.addi %0, %arg1 : i32
    %c0_i32 = arith.constant 0 : i32
    %c0_i32_0 = arith.constant 0 : i32
    return %1, %c0_i32 : i32, i32
  }
  func.func @transform_1(%arg0: i32, %arg1: i32) -> (i32, i32) {
    %c1_i32 = arith.constant 1 : i32
    %0 = arith.muli %arg0, %c1_i32 : i32
    %1 = arith.addi %0, %arg1 : i32
    %c0_i32 = arith.constant 0 : i32
    %c0_i32_0 = arith.constant 0 : i32
    return %1, %c0_i32 : i32, i32
  }
  func.func @transform_2(%arg0: i32, %arg1: i32) -> (i32, i32) {
    %c1_i32 = arith.constant 1 : i32
    %0 = arith.muli %arg0, %c1_i32 : i32
    %1 = arith.addi %0, %arg1 : i32
    %c0_i32 = arith.constant 0 : i32
    %c0_i32_0 = arith.constant 0 : i32
    return %1, %c0_i32 : i32, i32
  }
  func.func @transform_3(%arg0: i32, %arg1: i32) -> (i32, i32, i32) {
    %c0_i32 = arith.constant 0 : i32
    %c0_i32_0 = arith.constant 0 : i32
    %c0_i32_1 = arith.constant 0 : i32
    return %arg0, %c0_i32, %c0_i32_0 : i32, i32, i32
  }
}

</mosaic_0001>

<llo_original>
// kernel: tpu_custom_call.1
$region0: #{tpu_custom_call.1}
  #allocation0 [shape = 'u32[]', space=smem, size = 0x4, offset = 0x4, fixed_abs, tag = 'smem constant byte address 0x4 - core index']
  #allocation1 [shape = 'u32[144,128]{1,0:T(1,128)}', space=vmem, size = 0x12000, scoped, tag = 'internal scratch']
  %s0 = inlined_call_operand.hbm [shape: f32[16,128], index: 0, kind: input, shape index: {}]
  %s1 = inlined_call_operand.hbm [shape: f32[16,128], index: 1, kind: input, shape index: {}]
  %s2 = inlined_call_operand.hbm [shape: f32[16,128], index: 2, kind: input, shape index: {}]
  %s3 = inlined_call_operand.hbm [shape: f32[1,1,128], index: 3, kind: output, shape index: {}]
  %s4 = sld [smem:[#allocation0]]
  $region38: #{tpu_custom_call.1} parent=0
    _
  %s6 = ssub.s32 1, %s4
  %s7 = scalar_select 0, %s6, %s4
  $region1: #{tpu_custom_call.1} parent=0
    #allocation2 [shape = 'u8[8192]{0}', space=vmem, size = 0x2000, scoped, tag = 'input window, operand 0, single buffered']
    #allocation3 [shape = 's32[1]{0}', space=sflag, size = 0x4, scoped, tag = 'scoped memory for tpu_custom_call.1']
    #allocation4 [shape = 's32[1]{0}', space=sflag, size = 0x4, scoped, tag = 'scoped memory for tpu_custom_call.1']
    #allocation5 [shape = 'u8[8192]{0}', space=vmem, size = 0x2000, scoped, tag = 'input window, operand 1, single buffered']
    #allocation6 [shape = 's32[1]{0}', space=sflag, size = 0x4, scoped, tag = 'scoped memory for tpu_custom_call.1']
    #allocation7 [shape = 'u8[8192]{0}', space=vmem, size = 0x2000, scoped, tag = 'input window, operand 2, single buffered']
    #allocation8 [shape = 'u8[512]{0}', space=vmem, size = 0x400, scoped, tag = 'output window, operand 0, single buffered']
    %8 = vsyncpa [#allocation3], 0
    %9 = vsyncpa [#allocation6], 0
    %10 = vsyncpa [#allocation4], 0
    // Predicated region
    $region2: #{tpu_custom_call.1} parent=1 // pred_check
      _
    $region3: #{tpu_custom_call.1} parent=1 // pred_check_branch
      %12 = sbr.rel (0) target = $region5
    $region4: #{tpu_custom_call.1} parent=1 // pred_region
      %s13 = sadd.s32 0, 0
      %s14 = smul.u32 2, %s13
      %s16 = ssub.s32 256, 256
      %17 = vsyncadd [#allocation3], %s16
      %s18 = smul.addr %s14, 128
      %s19 = scalar_lea.hbm %s0, %s18
      %s20 = sshll.u32 [#allocation2], 4
      %s21 = int_to_ptr.vmem [resolvable:$true] %s20
      %26 = dma.hbm_to_vmem [thread:$0]  %s19, 256, %s21, [#allocation3], 128, 128, 8
    $region5: #{tpu_custom_call.1} parent=1 // pred_fallthru
      _
    // Predicated region
    $region6: #{tpu_custom_call.1} parent=1 // pred_check
      _
    $region7: #{tpu_custom_call.1} parent=1 // pred_check_branch
      %28 = sbr.rel (0) target = $region9
    $region8: #{tpu_custom_call.1} parent=1 // pred_region
      %s29 = sadd.s32 0, 0
      %s30 = smul.u32 2, %s29
      %s32 = ssub.s32 256, 256
      %33 = vsyncadd [#allocation6], %s32
      %s34 = smul.addr %s30, 128
      %s35 = scalar_lea.hbm %s1, %s34
      %s36 = sshll.u32 [#allocation5], 4
      %s37 = int_to_ptr.vmem [resolvable:$true] %s36
      %42 = dma.hbm_to_vmem [thread:$0]  %s35, 256, %s37, [#allocation6], 128, 128, 8
    $region9: #{tpu_custom_call.1} parent=1 // pred_fallthru
      _
    // Predicated region
    $region10: #{tpu_custom_call.1} parent=1 // pred_check
      _
    $region11: #{tpu_custom_call.1} parent=1 // pred_check_branch
      %44 = sbr.rel (0) target = $region13
    $region12: #{tpu_custom_call.1} parent=1 // pred_region
      %s45 = sadd.s32 0, 0
      %s46 = smul.u32 2, %s45
      %s48 = ssub.s32 256, 256
      %49 = vsyncadd [#allocation6], %s48
      %s50 = smul.addr %s46, 128
      %s51 = scalar_lea.hbm %s2, %s50
      %s52 = sshll.u32 [#allocation7], 4
      %s53 = int_to_ptr.vmem [resolvable:$true] %s52
      %58 = dma.hbm_to_vmem [thread:$0]  %s51, 256, %s53, [#allocation6], 128, 128, 8
    $region13: #{tpu_custom_call.1} parent=1 // pred_fallthru
      _
    // Predicated region
    $region14: #{tpu_custom_call.1} parent=1 // pred_check
      _
    $region15: #{tpu_custom_call.1} parent=1 // pred_check_branch
      %60 = sbr.rel (0) target = $region17
    $region16: #{tpu_custom_call.1} parent=1 // pred_region
      %61 = dma.done [#allocation3], 256
    $region17: #{tpu_custom_call.1} parent=1 // pred_fallthru
      _
    // Predicated region
    $region18: #{tpu_custom_call.1} parent=1 // pred_check
      _
    $region19: #{tpu_custom_call.1} parent=1 // pred_check_branch
      %63 = sbr.rel (0) target = $region21
    $region20: #{tpu_custom_call.1} parent=1 // pred_region
      %64 = dma.done [#allocation6], 256
    $region21: #{tpu_custom_call.1} parent=1 // pred_fallthru
      _
    // Predicated region
    $region22: #{tpu_custom_call.1} parent=1 // pred_check
      _
    $region23: #{tpu_custom_call.1} parent=1 // pred_check_branch
      %66 = sbr.rel (0) target = $region25
    $region24: #{tpu_custom_call.1} parent=1 // pred_region
      %67 = dma.done [#allocation6], 256
    $region25: #{tpu_custom_call.1} parent=1 // pred_fallthru
      _
    %s68 = sadd.s32 0, 0
    %s69 = smul.u32 2, %s68
    %s70 = sadd.s32 0, 0
    %s71 = smul.u32 2, %s70
    %s72 = sadd.s32 0, 0
    %s73 = smul.u32 2, %s72
    %p74 = scmp.eq.s32.totalorder 0, 0
    // Predicated region
    $region26: #{tpu_custom_call.1} parent=1 // pred_check
      %p75 = pneg %p74
    $region27: #{tpu_custom_call.1} parent=1 // pred_check_branch
      %77 = sbr.rel (%p75) target = $region29
    $region28: #{tpu_custom_call.1} parent=1 // pred_region
      %78 = vst [vmem:[#allocation8] sm:$0x1] 0.0
    $region29: #{tpu_custom_call.1} parent=1 // pred_fallthru
      _
    %v79 = vld [vmem:[#allocation2] sm:$0xff]
    %v80 = vld [vmem:[#allocation2 + $0x8] sm:$0xff]
    %v81 = vld [vmem:[#allocation5] sm:$0xff]
    %v82 = vld [vmem:[#allocation5 + $0x8] sm:$0xff]
    %v83 = vld [vmem:[#allocation7] sm:$0xff]
    %v84 = vld [vmem:[#allocation7 + $0x8] sm:$0xff]
    %v85 = vmax.f32 %v79, %v81
    %v86 = vmax.f32 %v80, %v82
    %v87 = vsub.f32 %v83, %v85
    %v88 = vsub.f32 %v84, %v86
    %v89 = vand.u32 2147483647, %v87
    %v90 = vand.u32 2147483647, %v88
    %v91 = vld [vmem:[#allocation8] sm:$0x1]
    %v92 = vadd.f32 %v89, %v90
    %v93 = vrot.slane %v92, 4
    %v94 = vadd.f32 %v92, %v93
    %v95 = vrot.slane %v94, 2
    %v96 = vadd.f32 %v94, %v95
    %v97 = vrot.slane %v96, 1
    %v98 = vadd.f32 %v96, %v97
    %v99 = vadd.f32 %v91, %v98
    %100 = vst [vmem:[#allocation8] sm:$0x1] %v99
    // Predicated region
    $region30: #{tpu_custom_call.1} parent=1 // pred_check
      _
    $region31: #{tpu_custom_call.1} parent=1 // pred_check_branch
      %102 = sbr.rel (0) target = $region33
    $region32: #{tpu_custom_call.1} parent=1 // pred_region
      %s104 = ssub.s32 16, 16
      %105 = vsyncadd [#allocation4], %s104
      %s107 = sshll.u32 [#allocation8], 4
      %s108 = int_to_ptr.vmem [resolvable:$true] %s107
      %110 = dma.vmem_to_hbm [thread:$0]  %s108, 16, %s3, [#allocation4]
    $region33: #{tpu_custom_call.1} parent=1 // pred_fallthru
      _
    // Predicated region
    $region34: #{tpu_custom_call.1} parent=1 // pred_check
      _
    $region35: #{tpu_custom_call.1} parent=1 // pred_check_branch
      %112 = sbr.rel (0) target = $region37
    $region36: #{tpu_custom_call.1} parent=1 // pred_region
      %113 = dma.done [#allocation4], 16
    $region37: #{tpu_custom_call.1} parent=1 // pred_fallthru
      _
    %114 = vsyncpa [#allocation3], 1
    %115 = vsyncpa [#allocation6], 1
    %116 = vsyncpa [#allocation4], 1

</llo_original>
